<compile_context>
chip_gen: v7x
topology: tpu7x:2x2x1
jax: 0.10.0
libtpu: 0.0.40
codegen_flags: <defaults>
</compile_context>

<pallas_src>
import functools

import jax
import jax.numpy as jnp
from jax.experimental import pallas as pl
from jax.experimental.pallas import tpu as pltpu

EMBED_DIM = 768    # all-mpnet-base-v2 embedding width
NUM_CLASSES = 3    # ['coding', 'math', 'none']
PAD_N = 128        # lane-dense compute width (one full lane group)


def _round_up(x: int, m: int) -> int:
    return ((x + m - 1) // m) * m


@functools.lru_cache(maxsize=1)
def _device_kind() -> str:
    try:
        return jax.devices()[0].device_kind.lower()
    except Exception:
        return ""


def _is_v7() -> bool:
    k = _device_kind()
    return ("v7" in k) or ("tpu7" in k)


def _max_tile_b() -> int:
    # v7x: bigger tiles amortize per-grid-step overhead; plenty of VMEM headroom.
    # v5e/v6e: 512 rows already sits near the HBM roofline and fits default scoped VMEM.
    return 1024 if _is_v7() else 512


def _batch_semantics():
    # Only CORE_PARALLEL actually splits the batch grid axis across v7x's 2 TensorCores.
    return (pltpu.CORE_PARALLEL,) if _is_v7() else (pltpu.PARALLEL,)


# ---------------------------------------------------------------------------
# Kernels
# ---------------------------------------------------------------------------

def _logits_kernel(x_ref, w_ref, b_ref, logits_ref):
    # x_ref: (TILE_B, 768)  w_ref: (768, 128) f32  b_ref: (1, 128) f32
    # logits_ref: (TILE_B, 3) f32  (slim writeback; masked 3-lane store is cheap
    # because this kernel is HBM-read-bound, not store-slot-bound).
    x = x_ref[...].astype(jnp.float32)
    acc = jnp.dot(x, w_ref[...], preferred_element_type=jnp.float32) + b_ref[...]
    logits_ref[...] = acc[:, :NUM_CLASSES]


def _ids_kernel(x_ref, w_ref, b_ref, ids_ref):
    # Classify path: only the argmax index leaves the kernel (no logits writeback).
    x = x_ref[...].astype(jnp.float32)
    acc = jnp.dot(x, w_ref[...], preferred_element_type=jnp.float32) + b_ref[...]
    # Padded lanes carry float32.min bias, so they can never win the max.
    row_max = jnp.max(acc, axis=-1, keepdims=True)
    col_ids = jax.lax.broadcasted_iota(jnp.int32, acc.shape, 1)
    sentinel = jnp.iinfo(jnp.int32).max
    ids = jnp.min(jnp.where(acc == row_max, col_ids, sentinel),
                  axis=-1, keepdims=True)
    ids_ref[...] = ids.astype(jnp.int32)


# ---------------------------------------------------------------------------
# Wrappers
# ---------------------------------------------------------------------------

def _prep_params(weight, bias):
    assert weight.shape == (EMBED_DIM, NUM_CLASSES)
    assert bias.shape == (NUM_CLASSES,)
    # Zero-pad weight to 128 output lanes; pad bias lanes with f32 min so the fused
    # argmax is restricted to the 3 real classes. (Tiny arrays; negligible cost.)
    w_p = jnp.pad(weight.astype(jnp.float32),
                  ((0, 0), (0, PAD_N - NUM_CLASSES)))
    neg = jnp.finfo(jnp.float32).min
    b_p = jnp.full((1, PAD_N), neg, dtype=jnp.float32)
    b_p = b_p.at[0, :NUM_CLASSES].set(bias.astype(jnp.float32))
    return w_p, b_p


def _choose_tiling(B: int):
    tile_b = min(_max_tile_b(), _round_up(B, 8))
    num_tiles = pl.cdiv(B, tile_b)
    # v7x: give each TensorCore at least one batch tile when the batch is big enough
    # to be worth splitting.
    if _is_v7() and num_tiles == 1 and B >= 256:
        tile_b = _round_up(pl.cdiv(B, 2), 8)
        num_tiles = pl.cdiv(B, tile_b)
    return tile_b, num_tiles


def _run(kernel, out_width, out_dtype, embeddings, weight, bias, x_dtype):
    B, D = embeddings.shape
    assert D == EMBED_DIM
    x = embeddings if embeddings.dtype == x_dtype else embeddings.astype(x_dtype)
    w_p, b_p = _prep_params(weight, bias)
    tile_b, num_tiles = _choose_tiling(B)

    return pl.pallas_call(
        kernel,
        out_shape=jax.ShapeDtypeStruct((B, out_width), out_dtype),
        grid=(num_tiles,),
        in_specs=[
            pl.BlockSpec((tile_b, D), lambda i: (i, 0)),    # embeddings tile (pipelined)
            pl.BlockSpec((D, PAD_N), lambda i: (0, 0)),     # weight (resident)
            pl.BlockSpec((1, PAD_N), lambda i: (0, 0)),     # bias (resident)
        ],
        out_specs=pl.BlockSpec((tile_b, out_width), lambda i: (i, 0)),
        compiler_params=pltpu.CompilerParams(
            dimension_semantics=_batch_semantics(),
        ),
    )(x, w_p, b_p)


def embedding_classifier_forward(embeddings, weight, bias, x_dtype=jnp.bfloat16):
    """nn.Linear(768, 3): y = x @ W + b (W stored pre-transposed as [768, 3]).

    x_dtype=jnp.bfloat16 (default) halves the dominant HBM read of the embeddings;
    pass jnp.float32 for exact torch-f32 numerics.
    """
    return _run(_logits_kernel, NUM_CLASSES, jnp.float32,
                embeddings, weight, bias, x_dtype)


def classify_prompts(embeddings, weight, bias, x_dtype=jnp.bfloat16):
    """Mirrors classify_prompt: fused in-kernel argmax over the 3 logits.
    Returns int32 indices into ['coding', 'math', 'none']; no logits writeback."""
    ids = _run(_ids_kernel, 1, jnp.int32, embeddings, weight, bias, x_dtype)
    return ids[:, 0]


# ---------------------------------------------------------------------------
# Self-test
# ---------------------------------------------------------------------------

if __name__ == "__main__":
    key = jax.random.PRNGKey(0)
    k_x, k_w, k_b = jax.random.split(key, 3)

    B = 8  # number of prompts in the batch
    # Stand-in for SentenceTransformer.encode(prompts) output.
    embeddings = jax.random.normal(k_x, (B, EMBED_DIM), dtype=jnp.float32)

    # Deterministic "random init" classifier params (nn.Linear(768, 3)).
    # torch stores weight as [3, 768]; we keep it pre-transposed as [768, 3].
    bound = 1.0 / (EMBED_DIM ** 0.5)
    weight = jax.random.uniform(k_w, (EMBED_DIM, NUM_CLASSES), dtype=jnp.float32,
                                minval=-bound, maxval=bound)
    bias = jax.random.uniform(k_b, (NUM_CLASSES,), dtype=jnp.float32,
                              minval=-bound, maxval=bound)

    # Pure-JAX reference.
    ref_logits = embeddings @ weight + bias[None, :]
    ref_preds = jnp.argmax(ref_logits, axis=-1).astype(jnp.int32)

    # f32 input path: torch nn.Linear parity.
    logits = jax.block_until_ready(
        embedding_classifier_forward(embeddings, weight, bias, x_dtype=jnp.float32))
    preds = jax.block_until_ready(
        classify_prompts(embeddings, weight, bias, x_dtype=jnp.float32))
    assert logits.shape == (B, NUM_CLASSES)
    assert preds.shape == (B,)
    assert jnp.allclose(logits, ref_logits, atol=1e-4, rtol=1e-4)
    assert jnp.array_equal(preds, ref_preds)

    # Default bf16-input path (halves the embedding read); compare against a
    # reference that applies the same input cast.
    logits_bf16 = jax.block_until_ready(
        embedding_classifier_forward(embeddings, weight, bias))
    ref_bf16 = (embeddings.astype(jnp.bfloat16).astype(jnp.float32) @ weight
                + bias[None, :])
    assert jnp.allclose(logits_bf16, ref_bf16, atol=2e-2, rtol=2e-2)

    # Ragged batch (B not a multiple of the 8-row sublane tile): exercises the
    # no-pad masked final block.
    B2 = 5
    logits2 = jax.block_until_ready(
        embedding_classifier_forward(embeddings[:B2], weight, bias,
                                     x_dtype=jnp.float32))
    preds2 = jax.block_until_ready(
        classify_prompts(embeddings[:B2], weight, bias, x_dtype=jnp.float32))
    assert logits2.shape == (B2, NUM_CLASSES)
    assert jnp.allclose(logits2, ref_logits[:B2], atol=1e-4, rtol=1e-4)
    assert jnp.array_equal(preds2, ref_preds[:B2])

    print("KERNEL_OK")
</pallas_src>

<mosaic_0001>
module attributes {stable_mosaic.version = 11 : i64} {
  func.func @_logits_kernel(%arg0: i32, %arg1: memref<8x768xf32, #tpu.memory_space<vmem>>, %arg2: memref<768x128xf32, #tpu.memory_space<vmem>>, %arg3: memref<1x128xf32, #tpu.memory_space<vmem>>, %arg4: memref<8x3xf32, #tpu.memory_space<vmem>>) attributes {dimension_semantics = [#tpu.dimension_semantics<parallel>], iteration_bounds = array<i64: 1>, scalar_prefetch = 0 : i64, scratch_operands = 0 : i64, tpu.core_type = #tpu.core_type<tc>, window_params = [{transform_indices = @transform_0, window_bounds = array<i64: 8, 768>}, {pipeline_mode = #tpu.pipeline_mode<synchronous>, transform_indices = @transform_1, window_bounds = array<i64: 768, 128>}, {pipeline_mode = #tpu.pipeline_mode<synchronous>, transform_indices = @transform_2, window_bounds = array<i64: 1, 128>}, {transform_indices = @transform_3, window_bounds = array<i64: 8, 3>}]} {
    %c0 = arith.constant 0 : index
    %c0_0 = arith.constant 0 : index
    %0 = vector.load %arg1[%c0, %c0_0] : memref<8x768xf32, #tpu.memory_space<vmem>>, vector<8x768xf32>
    %c0_1 = arith.constant 0 : index
    %c0_2 = arith.constant 0 : index
    %1 = vector.load %arg2[%c0_1, %c0_2] : memref<768x128xf32, #tpu.memory_space<vmem>>, vector<768x128xf32>
    %cst = arith.constant dense<0.000000e+00> : vector<8x128xf32>
    %2 = tpu.matmul %0, %1, %cst {dimension_numbers = #tpu.dot_dimension_numbers<[1], [0], [0], [1], [0, 0, 1, 1], [], []>} : vector<8x768xf32>, vector<768x128xf32>, vector<8x128xf32> -> vector<8x128xf32>
    %c0_3 = arith.constant 0 : index
    %c0_4 = arith.constant 0 : index
    %3 = vector.load %arg3[%c0_3, %c0_4] : memref<1x128xf32, #tpu.memory_space<vmem>>, vector<1x128xf32>
    %4 = vector.broadcast %3 : vector<1x128xf32> to vector<8x128xf32>
    %5 = arith.addf %2, %4 : vector<8x128xf32>
    %6 = vector.extract_strided_slice %5 {offsets = [0, 0], sizes = [8, 3], strides = [1, 1]} : vector<8x128xf32> to vector<8x3xf32>
    %c0_5 = arith.constant 0 : index
    %c0_6 = arith.constant 0 : index
    %7 = vector.load %arg4[%c0_5, %c0_6] : memref<8x3xf32, #tpu.memory_space<vmem>>, vector<8x3xf32>
    tpu.vector_store %arg4[%c0_5, %c0_6], %6 {strides = array<i32>} : memref<8x3xf32, #tpu.memory_space<vmem>>, vector<8x3xf32>,
    return
  }
  func.func @transform_0(%arg0: i32) -> (i32, i32) {
    %c0_i32 = arith.constant 0 : i32
    %c0_i32_0 = arith.constant 0 : i32
    return %arg0, %c0_i32 : i32, i32
  }
  func.func @transform_1(%arg0: i32) -> (i32, i32) {
    %c0_i32 = arith.constant 0 : i32
    %c0_i32_0 = arith.constant 0 : i32
    %c0_i32_1 = arith.constant 0 : i32
    return %c0_i32, %c0_i32_0 : i32, i32
  }
  func.func @transform_2(%arg0: i32) -> (i32, i32) {
    %c0_i32 = arith.constant 0 : i32
    %c0_i32_0 = arith.constant 0 : i32
    %c0_i32_1 = arith.constant 0 : i32
    return %c0_i32, %c0_i32_0 : i32, i32
  }
  func.func @transform_3(%arg0: i32) -> (i32, i32) {
    %c0_i32 = arith.constant 0 : i32
    %c0_i32_0 = arith.constant 0 : i32
    return %arg0, %c0_i32 : i32, i32
  }
}

</mosaic_0001>

<llo_original>
// kernel: tpu_custom_call.1
$region0: #{tpu_custom_call.1}
  #allocation0 [shape = 'u32[]', space=smem, size = 0x4, offset = 0x4, fixed_abs, tag = 'smem constant byte address 0x4 - core index']
  #allocation1 [shape = 'u32[144,128]{1,0:T(1,128)}', space=vmem, size = 0x12000, scoped, tag = 'internal scratch']
  %s0 = inlined_call_operand.hbm [shape: f32[8,768], index: 0, kind: input, shape index: {}]
  %s1 = inlined_call_operand.hbm [shape: f32[768,128], index: 1, kind: input, shape index: {}]
  %s2 = inlined_call_operand.vmem [shape: f32[1,128], index: 2, kind: input, shape index: {}]
  %s3 = inlined_call_operand.vmem [shape: f32[8,3], index: 3, kind: output, shape index: {}]
  %s4 = sld [smem:[#allocation0]]
  $region30: #{tpu_custom_call.1} parent=0
    _
  %s6 = ssub.s32 1, %s4
  %s7 = scalar_select 0, %s6, %s4
  $region1: #{tpu_custom_call.1} parent=0
    #allocation2 [shape = 'u8[24576]{0}', space=vmem, size = 0x6000, scoped, tag = 'input window, operand 0, single buffered']
    #allocation3 [shape = 's32[1]{0}', space=sflag, size = 0x4, scoped, tag = 'scoped memory for tpu_custom_call.1']
    #allocation4 [shape = 'u8[393216]{0}', space=vmem, size = 0x60000, scoped, tag = 'input window, operand 1, single buffered']
    #allocation5 [shape = 's32[1]{0}', space=sflag, size = 0x4, scoped, tag = 'scoped memory for tpu_custom_call.1']
    %8 = vsyncpa [#allocation3], 0
    %9 = vsyncpa [#allocation5], 0
    // Predicated region
    $region2: #{tpu_custom_call.1} parent=1 // pred_check
      _
    $region3: #{tpu_custom_call.1} parent=1 // pred_check_branch
      %11 = sbr.rel (0) target = $region5
    $region4: #{tpu_custom_call.1} parent=1 // pred_region
      %s13 = ssub.s32 768, 768
      %14 = vsyncadd [#allocation3], %s13
      %s16 = sshll.u32 [#allocation2], 4
      %s17 = int_to_ptr.vmem [resolvable:$true] %s16
      %19 = dma.hbm_to_vmem [thread:$0]  %s0, 768, %s17, [#allocation3]
    $region5: #{tpu_custom_call.1} parent=1 // pred_fallthru
      _
    // Predicated region
    $region6: #{tpu_custom_call.1} parent=1 // pred_check
      _
    $region7: #{tpu_custom_call.1} parent=1 // pred_check_branch
      %21 = sbr.rel (0) target = $region9
    $region8: #{tpu_custom_call.1} parent=1 // pred_region
      %s23 = ssub.s32 12288, 12288
      %24 = vsyncadd [#allocation5], %s23
      %s25 = sshll.u32 [#allocation4], 4
      %s26 = int_to_ptr.vmem [resolvable:$true] %s25
      %31 = dma.hbm_to_vmem [thread:$0]  %s1, 12288, %s26, [#allocation5], 128, 128, 8
    $region9: #{tpu_custom_call.1} parent=1 // pred_fallthru
      _
    // Predicated region
    $region10: #{tpu_custom_call.1} parent=1 // pred_check
      _
    $region11: #{tpu_custom_call.1} parent=1 // pred_check_branch
      %33 = sbr.rel (0) target = $region13
    $region12: #{tpu_custom_call.1} parent=1 // pred_region
      _
    $region13: #{tpu_custom_call.1} parent=1 // pred_fallthru
      _
    // Predicated region
    $region14: #{tpu_custom_call.1} parent=1 // pred_check
      _
    $region15: #{tpu_custom_call.1} parent=1 // pred_check_branch
      %35 = sbr.rel (0) target = $region17
    $region16: #{tpu_custom_call.1} parent=1 // pred_region
      %36 = dma.done [#allocation3], 768
    $region17: #{tpu_custom_call.1} parent=1 // pred_fallthru
      _
    // Predicated region
    $region18: #{tpu_custom_call.1} parent=1 // pred_check
      _
    $region19: #{tpu_custom_call.1} parent=1 // pred_check_branch
      %38 = sbr.rel (0) target = $region21
    $region20: #{tpu_custom_call.1} parent=1 // pred_region
      %39 = dma.done [#allocation5], 12288
    $region21: #{tpu_custom_call.1} parent=1 // pred_fallthru
      _
    %v40 = vld [vmem:[#allocation2] sm:$0xff]
    %v41 = vld [vmem:[#allocation2 + $0x8] sm:$0xff]
    %v42 = vld [vmem:[#allocation2 + $0x10] sm:$0xff]
    %v43 = vld [vmem:[#allocation2 + $0x18] sm:$0xff]
    %v44 = vld [vmem:[#allocation2 + $0x20] sm:$0xff]
    %v45 = vld [vmem:[#allocation2 + $0x28] sm:$0xff]
    %v46 = vld [vmem:[#allocation4] sm:$0xff]
    %v47 = vld [vmem:[#allocation4 + $0x8] sm:$0xff]
    %v48 = vld [vmem:[#allocation4 + $0x10] sm:$0xff]
    %v49 = vld [vmem:[#allocation4 + $0x18] sm:$0xff]
    %v50 = vld [vmem:[#allocation4 + $0x20] sm:$0xff]
    %v51 = vld [vmem:[#allocation4 + $0x28] sm:$0xff]
    %v52 = vld [vmem:[#allocation4 + $0x30] sm:$0xff]
    %v53 = vld [vmem:[#allocation4 + $0x38] sm:$0xff]
    %v54 = vld [vmem:[#allocation4 + $0x40] sm:$0xff]
    %v55 = vld [vmem:[#allocation4 + $0x48] sm:$0xff]
    %v56 = vld [vmem:[#allocation4 + $0x50] sm:$0xff]
    %v57 = vld [vmem:[#allocation4 + $0x58] sm:$0xff]
    %v58 = vld [vmem:[#allocation4 + $0x60] sm:$0xff]
    %v59 = vld [vmem:[#allocation4 + $0x68] sm:$0xff]
    %v60 = vld [vmem:[#allocation4 + $0x70] sm:$0xff]
    %v61 = vld [vmem:[#allocation4 + $0x78] sm:$0xff]
    %v62 = vld [vmem:[#allocation4 + $0x80] sm:$0xff]
    %v63 = vld [vmem:[#allocation4 + $0x88] sm:$0xff]
    %v64 = vld [vmem:[#allocation4 + $0x90] sm:$0xff]
    %v65 = vld [vmem:[#allocation4 + $0x98] sm:$0xff]
    %v66 = vld [vmem:[#allocation4 + $0xa0] sm:$0xff]
    %v67 = vld [vmem:[#allocation4 + $0xa8] sm:$0xff]
    %v68 = vld [vmem:[#allocation4 + $0xb0] sm:$0xff]
    %v69 = vld [vmem:[#allocation4 + $0xb8] sm:$0xff]
    %v70 = vld [vmem:[#allocation4 + $0xc0] sm:$0xff]
    %v71 = vld [vmem:[#allocation4 + $0xc8] sm:$0xff]
    %v72 = vld [vmem:[#allocation4 + $0xd0] sm:$0xff]
    %v73 = vld [vmem:[#allocation4 + $0xd8] sm:$0xff]
    %v74 = vld [vmem:[#allocation4 + $0xe0] sm:$0xff]
    %v75 = vld [vmem:[#allocation4 + $0xe8] sm:$0xff]
    %v76 = vld [vmem:[#allocation4 + $0xf0] sm:$0xff]
    %v77 = vld [vmem:[#allocation4 + $0xf8] sm:$0xff]
    %v78 = vld [vmem:[#allocation4 + $0x100] sm:$0xff]
    %v79 = vld [vmem:[#allocation4 + $0x108] sm:$0xff]
    %v80 = vld [vmem:[#allocation4 + $0x110] sm:$0xff]
    %v81 = vld [vmem:[#allocation4 + $0x118] sm:$0xff]
    %v82 = vld [vmem:[#allocation4 + $0x120] sm:$0xff]
    %v83 = vld [vmem:[#allocation4 + $0x128] sm:$0xff]
    %v84 = vld [vmem:[#allocation4 + $0x130] sm:$0xff]
    %v85 = vld [vmem:[#allocation4 + $0x138] sm:$0xff]
    %v86 = vld [vmem:[#allocation4 + $0x140] sm:$0xff]
    %v87 = vld [vmem:[#allocation4 + $0x148] sm:$0xff]
    %v88 = vld [vmem:[#allocation4 + $0x150] sm:$0xff]
    %v89 = vld [vmem:[#allocation4 + $0x158] sm:$0xff]
    %v90 = vld [vmem:[#allocation4 + $0x160] sm:$0xff]
    %v91 = vld [vmem:[#allocation4 + $0x168] sm:$0xff]
    %v92 = vld [vmem:[#allocation4 + $0x170] sm:$0xff]
    %v93 = vld [vmem:[#allocation4 + $0x178] sm:$0xff]
    %v94 = vld [vmem:[#allocation4 + $0x180] sm:$0xff]
    %v95 = vld [vmem:[#allocation4 + $0x188] sm:$0xff]
    %v96 = vld [vmem:[#allocation4 + $0x190] sm:$0xff]
    %v97 = vld [vmem:[#allocation4 + $0x198] sm:$0xff]
    %v98 = vld [vmem:[#allocation4 + $0x1a0] sm:$0xff]
    %v99 = vld [vmem:[#allocation4 + $0x1a8] sm:$0xff]
    %v100 = vld [vmem:[#allocation4 + $0x1b0] sm:$0xff]
    %v101 = vld [vmem:[#allocation4 + $0x1b8] sm:$0xff]
    %v102 = vld [vmem:[#allocation4 + $0x1c0] sm:$0xff]
    %v103 = vld [vmem:[#allocation4 + $0x1c8] sm:$0xff]
    %v104 = vld [vmem:[#allocation4 + $0x1d0] sm:$0xff]
    %v105 = vld [vmem:[#allocation4 + $0x1d8] sm:$0xff]
    %v106 = vld [vmem:[#allocation4 + $0x1e0] sm:$0xff]
    %v107 = vld [vmem:[#allocation4 + $0x1e8] sm:$0xff]
    %v108 = vld [vmem:[#allocation4 + $0x1f0] sm:$0xff]
    %v109 = vld [vmem:[#allocation4 + $0x1f8] sm:$0xff]
    %v110 = vld [vmem:[#allocation4 + $0x200] sm:$0xff]
    %v111 = vld [vmem:[#allocation4 + $0x208] sm:$0xff]
    %v112 = vld [vmem:[#allocation4 + $0x210] sm:$0xff]
    %v113 = vld [vmem:[#allocation4 + $0x218] sm:$0xff]
    %v114 = vld [vmem:[#allocation4 + $0x220] sm:$0xff]
    %v115 = vld [vmem:[#allocation4 + $0x228] sm:$0xff]
    %v116 = vld [vmem:[#allocation4 + $0x230] sm:$0xff]
    %v117 = vld [vmem:[#allocation4 + $0x238] sm:$0xff]
    %v118 = vld [vmem:[#allocation4 + $0x240] sm:$0xff]
    %v119 = vld [vmem:[#allocation4 + $0x248] sm:$0xff]
    %v120 = vld [vmem:[#allocation4 + $0x250] sm:$0xff]
    %v121 = vld [vmem:[#allocation4 + $0x258] sm:$0xff]
    %v122 = vld [vmem:[#allocation4 + $0x260] sm:$0xff]
    %v123 = vld [vmem:[#allocation4 + $0x268] sm:$0xff]
    %v124 = vld [vmem:[#allocation4 + $0x270] sm:$0xff]
    %v125 = vld [vmem:[#allocation4 + $0x278] sm:$0xff]
    %v126 = vld [vmem:[#allocation4 + $0x280] sm:$0xff]
    %v127 = vld [vmem:[#allocation4 + $0x288] sm:$0xff]
    %v128 = vld [vmem:[#allocation4 + $0x290] sm:$0xff]
    %v129 = vld [vmem:[#allocation4 + $0x298] sm:$0xff]
    %v130 = vld [vmem:[#allocation4 + $0x2a0] sm:$0xff]
    %v131 = vld [vmem:[#allocation4 + $0x2a8] sm:$0xff]
    %v132 = vld [vmem:[#allocation4 + $0x2b0] sm:$0xff]
    %v133 = vld [vmem:[#allocation4 + $0x2b8] sm:$0xff]
    %v134 = vld [vmem:[#allocation4 + $0x2c0] sm:$0xff]
    %v135 = vld [vmem:[#allocation4 + $0x2c8] sm:$0xff]
    %v136 = vld [vmem:[#allocation4 + $0x2d0] sm:$0xff]
    %v137 = vld [vmem:[#allocation4 + $0x2d8] sm:$0xff]
    %v138 = vld [vmem:[#allocation4 + $0x2e0] sm:$0xff]
    %v139 = vld [vmem:[#allocation4 + $0x2e8] sm:$0xff]
    %v140 = vld [vmem:[#allocation4 + $0x2f0] sm:$0xff]
    %v141 = vld [vmem:[#allocation4 + $0x2f8] sm:$0xff]
    %v142 = vld [vmem:[%s2] sm:$0x1]
    %v144 = vlaneseq
    %v145 = vshrl.u32 %v144, 7
    %v146 = vsub.s32 0, %v145
    %v147 = vrot.slane %v142, %v146
    %149 = vmatprep.subr.mxu0 0.0
    %150 = vmatpush1.msra.mxu0 %v46
    %151 = vmatprep.subr.mxu0 0.0
    %152 = vmatpush1.msra.mxu0 %v47
    %153 = vmatprep.subr.mxu0 0.0
    %154 = vmatpush1.msra.mxu0 %v48
    %155 = vmatprep.subr.mxu0 0.0
    %156 = vmatpush1.msra.mxu0 %v49
    %157 = vmatprep.subr.mxu0 0.0
    %158 = vmatpush1.msra.mxu0 %v50
    %159 = vmatprep.subr.mxu0 0.0
    %160 = vmatpush1.msra.mxu0 %v51
    %161 = vmatprep.subr.mxu0 0.0
    %162 = vmatpush1.msra.mxu0 %v52
    %163 = vmatprep.subr.mxu0 0.0
    %164 = vmatpush1.msra.mxu0 %v53
    %165 = vmatprep.subr.mxu0 0.0
    %166 = vmatpush1.msra.mxu0 %v54
    %167 = vmatprep.subr.mxu0 0.0
    %168 = vmatpush1.msra.mxu0 %v55
    %169 = vmatprep.subr.mxu0 0.0
    %170 = vmatpush1.msra.mxu0 %v56
    %171 = vmatprep.subr.mxu0 0.0
    %172 = vmatpush1.msra.mxu0 %v57
    %173 = vmatprep.subr.mxu0 0.0
    %174 = vmatpush1.msra.mxu0 %v58
    %175 = vmatprep.subr.mxu0 0.0
    %176 = vmatpush1.msra.mxu0 %v59
    %177 = vmatprep.subr.mxu0 0.0
    %178 = vmatpush1.msra.mxu0 %v60
    %179 = vmatprep.subr.mxu0 0.0
    %180 = vmatpush1.msra.mxu0 %v61
    %181 = vmatprep.subr.mxu0 0.0
    %182 = vmatpush1.msra.mxu0 %v62
    %183 = vmatprep.subr.mxu0 0.0
    %184 = vmatpush1.msra.mxu0 %v63
    %185 = vmatprep.subr.mxu0 0.0
    %186 = vmatpush1.msra.mxu0 %v64
    %187 = vmatprep.subr.mxu0 0.0
    %188 = vmatpush1.msra.mxu0 %v65
    %189 = vmatprep.subr.mxu0 0.0
    %190 = vmatpush1.msra.mxu0 %v66
    %191 = vmatprep.subr.mxu0 0.0
    %192 = vmatpush1.msra.mxu0 %v67
    %193 = vmatprep.subr.mxu0 0.0
    %194 = vmatpush1.msra.mxu0 %v68
    %195 = vmatprep.subr.mxu0 0.0
    %196 = vmatpush1.msra.mxu0 %v69
    %197 = vmatprep.subr.mxu0 0.0
    %198 = vmatpush1.msra.mxu0 %v70
    %199 = vmatprep.subr.mxu0 0.0
    %200 = vmatpush1.msra.mxu0 %v71
    %201 = vmatprep.subr.mxu0 0.0
    %202 = vmatpush1.msra.mxu0 %v72
    %203 = vmatprep.subr.mxu0 0.0
    %204 = vmatpush1.msra.mxu0 %v73
    %205 = vmatprep.subr.mxu0 0.0
    %206 = vmatpush1.msra.mxu0 %v74
    %207 = vmatprep.subr.mxu0 0.0
    %208 = vmatpush1.msra.mxu0 %v75
    %209 = vmatprep.subr.mxu0 0.0
    %210 = vmatpush1.msra.mxu0 %v76
    %211 = vmatprep.subr.mxu0 0.0
    %212 = vmatpush1.msra.mxu0 %v77
    %213 = vmatprep.mubr.f32.mxu0 %v41
    %214 = vmatmul.mubr.f32.gmra.mrb[0].mxu0 %v40
    %v215 = vpop.f32.mrb[0].mxu0
    %v216 = vadd.f32 %v147, %v215
    %v217 = vpop.f32.mrb[0].mxu0
    %218 = vdwg.mxu0
    %219 = vmatprep.subr.mxu0 0.0
    %220 = vmatpush1.msra.mxu0 %v78
    %221 = vmatprep.subr.mxu0 0.0
    %222 = vmatpush1.msra.mxu0 %v79
    %223 = vmatprep.subr.mxu0 0.0
    %224 = vmatpush1.msra.mxu0 %v80
    %225 = vmatprep.subr.mxu0 0.0
    %226 = vmatpush1.msra.mxu0 %v81
    %227 = vmatprep.subr.mxu0 0.0
    %228 = vmatpush1.msra.mxu0 %v82
    %229 = vmatprep.subr.mxu0 0.0
    %230 = vmatpush1.msra.mxu0 %v83
    %231 = vmatprep.subr.mxu0 0.0
    %232 = vmatpush1.msra.mxu0 %v84
    %233 = vmatprep.subr.mxu0 0.0
    %234 = vmatpush1.msra.mxu0 %v85
    %235 = vmatprep.subr.mxu0 0.0
    %236 = vmatpush1.msra.mxu0 %v86
    %237 = vmatprep.subr.mxu0 0.0
    %238 = vmatpush1.msra.mxu0 %v87
    %239 = vmatprep.subr.mxu0 0.0
    %240 = vmatpush1.msra.mxu0 %v88
    %241 = vmatprep.subr.mxu0 0.0
    %242 = vmatpush1.msra.mxu0 %v89
    %243 = vmatprep.subr.mxu0 0.0
    %244 = vmatpush1.msra.mxu0 %v90
    %245 = vmatprep.subr.mxu0 0.0
    %246 = vmatpush1.msra.mxu0 %v91
    %247 = vmatprep.subr.mxu0 0.0
    %248 = vmatpush1.msra.mxu0 %v92
    %249 = vmatprep.subr.mxu0 0.0
    %250 = vmatpush1.msra.mxu0 %v93
    %251 = vmatprep.subr.mxu0 0.0
    %252 = vmatpush1.msra.mxu0 %v94
    %253 = vmatprep.subr.mxu0 0.0
    %254 = vmatpush1.msra.mxu0 %v95
    %255 = vmatprep.subr.mxu0 0.0
    %256 = vmatpush1.msra.mxu0 %v96
    %257 = vmatprep.subr.mxu0 0.0
    %258 = vmatpush1.msra.mxu0 %v97
    %259 = vmatprep.subr.mxu0 0.0
    %260 = vmatpush1.msra.mxu0 %v98
    %261 = vmatprep.subr.mxu0 0.0
    %262 = vmatpush1.msra.mxu0 %v99
    %263 = vmatprep.subr.mxu0 0.0
    %264 = vmatpush1.msra.mxu0 %v100
    %265 = vmatprep.subr.mxu0 0.0
    %266 = vmatpush1.msra.mxu0 %v101
    %267 = vmatprep.subr.mxu0 0.0
    %268 = vmatpush1.msra.mxu0 %v102
    %269 = vmatprep.subr.mxu0 0.0
    %270 = vmatpush1.msra.mxu0 %v103
    %271 = vmatprep.subr.mxu0 0.0
    %272 = vmatpush1.msra.mxu0 %v104
    %273 = vmatprep.subr.mxu0 0.0
    %274 = vmatpush1.msra.mxu0 %v105
    %275 = vmatprep.subr.mxu0 0.0
    %276 = vmatpush1.msra.mxu0 %v106
    %277 = vmatprep.subr.mxu0 0.0
    %278 = vmatpush1.msra.mxu0 %v107
    %279 = vmatprep.subr.mxu0 0.0
    %280 = vmatpush1.msra.mxu0 %v108
    %281 = vmatprep.subr.mxu0 0.0
    %282 = vmatpush1.msra.mxu0 %v109
    %283 = vmatprep.mubr.f32.mxu0 %v43
    %284 = vmatmul.mubr.f32.gmra.mrb[0].mxu0 %v42
    %v285 = vpop.f32.mrb[0].mxu0
    %v286 = vadd.f32 %v216, %v285
    %v287 = vpop.f32.mrb[0].mxu0
    %288 = vdwg.mxu0
    %289 = vmatprep.subr.mxu0 0.0
    %290 = vmatpush1.msra.mxu0 %v110
    %291 = vmatprep.subr.mxu0 0.0
    %292 = vmatpush1.msra.mxu0 %v111
    %293 = vmatprep.subr.mxu0 0.0
    %294 = vmatpush1.msra.mxu0 %v112
    %295 = vmatprep.subr.mxu0 0.0
    %296 = vmatpush1.msra.mxu0 %v113
    %297 = vmatprep.subr.mxu0 0.0
    %298 = vmatpush1.msra.mxu0 %v114
    %299 = vmatprep.subr.mxu0 0.0
    %300 = vmatpush1.msra.mxu0 %v115
    %301 = vmatprep.subr.mxu0 0.0
    %302 = vmatpush1.msra.mxu0 %v116
    %303 = vmatprep.subr.mxu0 0.0
    %304 = vmatpush1.msra.mxu0 %v117
    %305 = vmatprep.subr.mxu0 0.0
    %306 = vmatpush1.msra.mxu0 %v118
    %307 = vmatprep.subr.mxu0 0.0
    %308 = vmatpush1.msra.mxu0 %v119
    %309 = vmatprep.subr.mxu0 0.0
    %310 = vmatpush1.msra.mxu0 %v120
    %311 = vmatprep.subr.mxu0 0.0
    %312 = vmatpush1.msra.mxu0 %v121
    %313 = vmatprep.subr.mxu0 0.0
    %314 = vmatpush1.msra.mxu0 %v122
    %315 = vmatprep.subr.mxu0 0.0
    %316 = vmatpush1.msra.mxu0 %v123
    %317 = vmatprep.subr.mxu0 0.0
    %318 = vmatpush1.msra.mxu0 %v124
    %319 = vmatprep.subr.mxu0 0.0
    %320 = vmatpush1.msra.mxu0 %v125
    %321 = vmatprep.subr.mxu0 0.0
    %322 = vmatpush1.msra.mxu0 %v126
    %323 = vmatprep.subr.mxu0 0.0
    %324 = vmatpush1.msra.mxu0 %v127
    %325 = vmatprep.subr.mxu0 0.0
    %326 = vmatpush1.msra.mxu0 %v128
    %327 = vmatprep.subr.mxu0 0.0
    %328 = vmatpush1.msra.mxu0 %v129
    %329 = vmatprep.subr.mxu0 0.0
    %330 = vmatpush1.msra.mxu0 %v130
    %331 = vmatprep.subr.mxu0 0.0
    %332 = vmatpush1.msra.mxu0 %v131
    %333 = vmatprep.subr.mxu0 0.0
    %334 = vmatpush1.msra.mxu0 %v132
    %335 = vmatprep.subr.mxu0 0.0
    %336 = vmatpush1.msra.mxu0 %v133
    %337 = vmatprep.subr.mxu0 0.0
    %338 = vmatpush1.msra.mxu0 %v134
    %339 = vmatprep.subr.mxu0 0.0
    %340 = vmatpush1.msra.mxu0 %v135
    %341 = vmatprep.subr.mxu0 0.0
    %342 = vmatpush1.msra.mxu0 %v136
    %343 = vmatprep.subr.mxu0 0.0
    %344 = vmatpush1.msra.mxu0 %v137
    %345 = vmatprep.subr.mxu0 0.0
    %346 = vmatpush1.msra.mxu0 %v138
    %347 = vmatprep.subr.mxu0 0.0
    %348 = vmatpush1.msra.mxu0 %v139
    %349 = vmatprep.subr.mxu0 0.0
    %350 = vmatpush1.msra.mxu0 %v140
    %351 = vmatprep.subr.mxu0 0.0
    %352 = vmatpush1.msra.mxu0 %v141
    %353 = vmatprep.mubr.f32.mxu0 %v45
    %354 = vmatmul.mubr.f32.gmra.mrb[0].mxu0 %v44
    %v355 = vpop.f32.mrb[0].mxu0
    %v356 = vadd.f32 %v286, %v355
    %v357 = vpop.f32.mrb[0].mxu0
    %358 = vdwg.mxu0
    %vm359 = vcmask 23552
    %360 = vst.msk [vmem:[%s3] sm:$0xff] %vm359, %v356
    // Predicated region
    $region22: #{tpu_custom_call.1} parent=1 // pred_check
      _
    $region23: #{tpu_custom_call.1} parent=1 // pred_check_branch
      %362 = sbr.rel (0) target = $region25
    $region24: #{tpu_custom_call.1} parent=1 // pred_region
      _
    $region25: #{tpu_custom_call.1} parent=1 // pred_fallthru
      _
    // Predicated region
    $region26: #{tpu_custom_call.1} parent=1 // pred_check
      _
    $region27: #{tpu_custom_call.1} parent=1 // pred_check_branch
      %364 = sbr.rel (0) target = $region29
    $region28: #{tpu_custom_call.1} parent=1 // pred_region
      _
    $region29: #{tpu_custom_call.1} parent=1 // pred_fallthru
      _
    %365 = vsyncpa [#allocation3], 1
    %366 = vsyncpa [#allocation5], 1

</llo_original>
